<compile_context>
chip_gen: v7x
topology: tpu7x:2x2x1
jax: 0.10.0
libtpu: 0.0.40
codegen_flags: <defaults>
</compile_context>

<pallas_src>
import jax
import jax.numpy as jnp
import numpy as np
from jax.experimental import pallas as pl
from jax.experimental.pallas import tpu as pltpu


def l2norm_jax(x, axis=1):
    """Reference of the PyTorch l2norm helper (norm over `axis`)."""
    norm = jnp.sqrt(jnp.sum(x * x, axis=axis, keepdims=True))
    return x / norm


# ----------------------------------------------------------------------------
# Kernels
# ----------------------------------------------------------------------------
def _manipulate_kernel(x_ref, ori_ref, delta_ref, out_ref):
    # x_ref:     (1, C, TP)  spatial embedding tile (channels on sublanes,
    #                        pixels on lanes)
    # ori_ref:   (1, C, 1)   original caption embedding
    # delta_ref: (1, C, 1)   alpha * (new_txt - ori_txt), precomputed in wrapper
    x = x_ref[...].astype(jnp.float32)
    o = ori_ref[...].astype(jnp.float32)
    d = delta_ref[...].astype(jnp.float32)

    # per-pixel projection onto the original caption (sublane / XLU reduce)
    proj = jnp.sum(x * o, axis=1, keepdims=True)          # (1, 1, TP)
    # fused edit: x += proj * alpha*(new - ori)
    x = x + proj * d

    # l2norm over the channel dimension (rsqrt -> EUP slot, then one multiply)
    norm_sq = jnp.sum(x * x, axis=1, keepdims=True)       # (1, 1, TP)
    out_ref[...] = (x * jax.lax.rsqrt(norm_sq)).astype(out_ref.dtype)


def _manipulate_global_kernel(x_ref, delta_ref, out_ref):
    # global_edit=True: proj == 1 everywhere, so the caption projection and
    # the `ori` input stream are dropped entirely.
    x = x_ref[...].astype(jnp.float32)
    d = delta_ref[...].astype(jnp.float32)
    x = x + d
    norm_sq = jnp.sum(x * x, axis=1, keepdims=True)
    out_ref[...] = (x * jax.lax.rsqrt(norm_sq)).astype(out_ref.dtype)


# ----------------------------------------------------------------------------
# Tiling helpers
# ----------------------------------------------------------------------------
def _vmem_capacity_bytes():
    """Per-generation physical VMEM size; conservative fallback if unknown."""
    try:
        info = pltpu.get_tpu_info()
        cap = getattr(info, "vmem_capacity_bytes", None)
        if cap:
            return int(cap)
    except Exception:
        pass
    return 64 * 1024 * 1024  # assume v7x-sized VMEM if the query fails


def _choose_pixel_tile(P_pad, C, itemsize, batch, min_steps=4):
    """Pick (pixel-tile, vmem_limit_bytes).

    - target block ~12 MiB on 128-MiB-VMEM parts (v5e/v6e), ~6 MiB on 64-MiB
      parts (v7x), so double-buffered in+out plus f32 temporaries still fit.
    - tile is a multiple of 128 lanes dividing P_pad (lane-dense stores).
    - tile is shrunk if needed so the grid has >= min_steps steps, so both
      v7x TensorCores get work via dimension_semantics="parallel".
    """
    vmem_cap = _vmem_capacity_bytes()
    if vmem_cap >= 100 * 1024 * 1024:          # v5e / v6e (128 MiB VMEM)
        target_block = 12 * 1024 * 1024
        vmem_limit = 96 * 1024 * 1024
    else:                                      # v7x (64 MiB VMEM)
        target_block = 6 * 1024 * 1024
        vmem_limit = 48 * 1024 * 1024

    if P_pad % 128 != 0:                       # should not happen (wrapper pads)
        return P_pad, vmem_limit

    bytes_per_pixel_col = max(1, C * itemsize)
    max_tp = max(128, (target_block // bytes_per_pixel_col) // 128 * 128)
    tp = min(max_tp, P_pad)
    tp = max(128, (tp // 128) * 128)
    while P_pad % tp != 0:
        tp -= 128

    # Make sure there are enough grid steps to feed both TensorCores (v7x).
    while tp > 128 and batch * (P_pad // tp) < min_steps:
        new_tp = max(128, (tp // 2 // 128) * 128)
        while new_tp > 128 and P_pad % new_tp != 0:
            new_tp -= 128
        if new_tp == tp:
            break
        tp = new_tp

    return tp, vmem_limit


# ----------------------------------------------------------------------------
# Wrapper
# ----------------------------------------------------------------------------
def manipulate_pallas(spatial_embedding_nchw, ori_txt, new_txt,
                      alpha=1.0, global_edit=False):
    """Pallas version of OpenEditModel.manipulate's embedding-editing math.

    spatial_embedding_nchw : (B, C, H, W)  (PyTorch NCHW convention)
    ori_txt, new_txt       : (B, C)
    returns                : (B, C, H, W)  edited, channel-l2-normalized embedding
    """
    B, C, H, W = spatial_embedding_nchw.shape
    P = H * W
    P_pad = -(-P // 128) * 128                 # round up to multiple of 128 lanes

    # NCHW -> (B, C, P): pure reshape (no transpose, no extra HBM pass)
    x = spatial_embedding_nchw.reshape(B, C, P)
    if P_pad != P:
        # pixels are independent; zero-pad the lane axis and slice off after
        x = jnp.pad(x, ((0, 0), (0, 0), (0, P_pad - P)))

    # Precompute alpha*(new - ori) once (f32) -- removes one input stream and
    # all per-step caption arithmetic; alpha changes never retrace the kernel.
    ori = ori_txt.reshape(B, C, 1)
    delta = (jnp.asarray(alpha, jnp.float32)
             * (new_txt.astype(jnp.float32) - ori_txt.astype(jnp.float32))
             ).reshape(B, C, 1)

    TP, vmem_limit = _choose_pixel_tile(P_pad, C, x.dtype.itemsize, B)
    grid = (B, P_pad // TP)

    x_spec = pl.BlockSpec((1, C, TP), lambda b, p: (b, 0, p))
    cap_spec = pl.BlockSpec((1, C, 1), lambda b, p: (b, 0, 0))
    out_spec = pl.BlockSpec((1, C, TP), lambda b, p: (b, 0, p))

    if global_edit:
        kernel = _manipulate_global_kernel
        in_specs = [x_spec, cap_spec]
        args = (x, delta)
    else:
        kernel = _manipulate_kernel
        in_specs = [x_spec, cap_spec, cap_spec]
        args = (x, ori, delta)

    # NOTE: if a v7x profile shows exposed DMA at this tile size, bump
    # x_spec/out_spec to pipeline_mode=pl.Buffered(3); kept at 2 here to leave
    # VMEM headroom. input_output_aliases could halve HBM footprint at high
    # resolution but is omitted to keep the caller's embedding buffer valid.
    out = pl.pallas_call(
        kernel,
        out_shape=jax.ShapeDtypeStruct((B, C, P_pad), x.dtype),
        grid_spec=pltpu.PrefetchScalarGridSpec(
            num_scalar_prefetch=0,
            grid=grid,
            in_specs=in_specs,
            out_specs=out_spec,
        ),
        compiler_params=pltpu.CompilerParams(
            dimension_semantics=("parallel", "parallel"),
            vmem_limit_bytes=vmem_limit,
        ),
    )(*args)

    if P_pad != P:
        out = out[:, :, :P]
    # (B, C, P) -> NCHW: again a free reshape
    return out.reshape(B, C, H, W)


def manipulate_reference(spatial_embedding, ori_txt, new_txt,
                         alpha=1.0, global_edit=False):
    """Pure-JAX transcription of the PyTorch code (NCHW), for verification."""
    B, C, H, W = spatial_embedding.shape
    o = ori_txt[:, :, None, None]
    n = new_txt[:, :, None, None]
    proj = spatial_embedding * o                                  # (B, C, H, W)
    proj_s = jnp.sum(proj, axis=1, keepdims=True)                 # (B, 1, H, W)
    proj = jnp.broadcast_to(proj_s, (B, C, H, W))
    if global_edit:
        proj = jnp.ones_like(proj)
    emb = spatial_embedding - alpha * proj * o
    emb = emb + alpha * proj * n
    return l2norm_jax(emb, axis=1)


# TODO(synk): netE / netG / netD / VGGLoss / GANLoss / EncoderText (GRU) are
# external networks not defined in this module; only the in-module manipulate
# math is implemented as a Pallas kernel.

if __name__ == "__main__":
    # Small, deterministic synthetic shapes consistent with the forward pass
    # (the real model uses C=1024 spatial embeddings; scaled down here).
    B, C, H, W = 2, 32, 16, 16

    key = jax.random.PRNGKey(0)
    k1, k2, k3 = jax.random.split(key, 3)

    # "spatial embedding" from netE(real_image, norm=True): channel-l2-normalized
    spatial = jax.random.normal(k1, (B, C, H, W), dtype=jnp.float32)
    spatial = l2norm_jax(spatial, axis=1)

    # caption embeddings from the VSE text encoder (l2-normalized vectors)
    ori_txt = jax.random.normal(k2, (B, C), dtype=jnp.float32)
    ori_txt = ori_txt / jnp.linalg.norm(ori_txt, axis=1, keepdims=True)
    new_txt = jax.random.normal(k3, (B, C), dtype=jnp.float32)
    new_txt = new_txt / jnp.linalg.norm(new_txt, axis=1, keepdims=True)

    alpha = 1.0

    # main path (local edit, 128-multiple pixel count)
    out = manipulate_pallas(spatial, ori_txt, new_txt, alpha=alpha,
                            global_edit=False)
    out = jax.block_until_ready(out)
    ref = manipulate_reference(spatial, ori_txt, new_txt, alpha=alpha,
                               global_edit=False)
    np.testing.assert_allclose(np.asarray(out), np.asarray(ref),
                               rtol=1e-5, atol=1e-5)

    # global_edit branch (projection reduce and ori stream dropped)
    out_g = manipulate_pallas(spatial, ori_txt, new_txt, alpha=alpha,
                              global_edit=True)
    ref_g = manipulate_reference(spatial, ori_txt, new_txt, alpha=alpha,
                                 global_edit=True)
    np.testing.assert_allclose(np.asarray(jax.block_until_ready(out_g)),
                               np.asarray(ref_g), rtol=1e-5, atol=1e-5)

    # non-128-multiple spatial size exercises the lane-padding path
    H2, W2 = 10, 10
    spatial2 = l2norm_jax(
        jax.random.normal(k1, (B, C, H2, W2), dtype=jnp.float32), axis=1)
    out_p = manipulate_pallas(spatial2, ori_txt, new_txt, alpha=0.5,
                              global_edit=False)
    ref_p = manipulate_reference(spatial2, ori_txt, new_txt, alpha=0.5,
                                 global_edit=False)
    np.testing.assert_allclose(np.asarray(jax.block_until_ready(out_p)),
                               np.asarray(ref_p), rtol=1e-5, atol=1e-5)

    print("KERNEL_OK")
</pallas_src>

<mosaic_0001>
module attributes {stable_mosaic.version = 11 : i64} {
  func.func @_manipulate_kernel(%arg0: i32, %arg1: i32, %arg2: memref<1x32x128xf32, #tpu.memory_space<vmem>>, %arg3: memref<1x32x1xf32, #tpu.memory_space<vmem>>, %arg4: memref<1x32x1xf32, #tpu.memory_space<vmem>>, %arg5: memref<1x32x128xf32, #tpu.memory_space<vmem>>) attributes {dimension_semantics = [#tpu.dimension_semantics<parallel>, #tpu.dimension_semantics<parallel>], iteration_bounds = array<i64: 2, 2>, scalar_prefetch = 0 : i64, scratch_operands = 0 : i64, tpu.core_type = #tpu.core_type<tc>, window_params = [{transform_indices = @transform_0, window_bounds = array<i64: 1, 32, 128>}, {transform_indices = @transform_1, window_bounds = array<i64: 1, 32, 1>}, {transform_indices = @transform_2, window_bounds = array<i64: 1, 32, 1>}, {transform_indices = @transform_3, window_bounds = array<i64: 1, 32, 128>}]} {
    %c0 = arith.constant 0 : index
    %c0_0 = arith.constant 0 : index
    %c0_1 = arith.constant 0 : index
    %0 = vector.load %arg2[%c0, %c0_0, %c0_1] : memref<1x32x128xf32, #tpu.memory_space<vmem>>, vector<1x32x128xf32>
    %c0_2 = arith.constant 0 : index
    %c0_3 = arith.constant 0 : index
    %c0_4 = arith.constant 0 : index
    %1 = vector.load %arg3[%c0_2, %c0_3, %c0_4] : memref<1x32x1xf32, #tpu.memory_space<vmem>>, vector<1x32x1xf32>
    %c0_5 = arith.constant 0 : index
    %c0_6 = arith.constant 0 : index
    %c0_7 = arith.constant 0 : index
    %2 = vector.load %arg4[%c0_5, %c0_6, %c0_7] : memref<1x32x1xf32, #tpu.memory_space<vmem>>, vector<1x32x1xf32>
    %3 = vector.broadcast %1 : vector<1x32x1xf32> to vector<1x32x128xf32>
    %4 = arith.mulf %0, %3 : vector<1x32x128xf32>
    %cst = arith.constant dense<0.000000e+00> : vector<1x128xf32>
    %5 = vector.multi_reduction <add>, %4, %cst [1] : vector<1x32x128xf32> to vector<1x128xf32>
    %6 = vector.shape_cast %5 : vector<1x128xf32> to vector<1x1x128xf32>
    %7 = vector.broadcast %6 : vector<1x1x128xf32> to vector<1x32x128xf32>
    %8 = vector.broadcast %2 : vector<1x32x1xf32> to vector<1x32x128xf32>
    %9 = arith.mulf %7, %8 : vector<1x32x128xf32>
    %10 = arith.addf %0, %9 : vector<1x32x128xf32>
    %11 = arith.mulf %10, %10 : vector<1x32x128xf32>
    %cst_8 = arith.constant dense<0.000000e+00> : vector<1x128xf32>
    %12 = vector.multi_reduction <add>, %11, %cst_8 [1] : vector<1x32x128xf32> to vector<1x128xf32>
    %13 = vector.shape_cast %12 : vector<1x128xf32> to vector<1x1x128xf32>
    %14 = math.rsqrt %13 : vector<1x1x128xf32>
    %15 = vector.broadcast %14 : vector<1x1x128xf32> to vector<1x32x128xf32>
    %16 = arith.mulf %10, %15 : vector<1x32x128xf32>
    %c0_9 = arith.constant 0 : index
    %c0_10 = arith.constant 0 : index
    %c0_11 = arith.constant 0 : index
    %17 = vector.load %arg5[%c0_9, %c0_10, %c0_11] : memref<1x32x128xf32, #tpu.memory_space<vmem>>, vector<1x32x128xf32>
    tpu.vector_store %arg5[%c0_9, %c0_10, %c0_11], %16 {strides = array<i32>} : memref<1x32x128xf32, #tpu.memory_space<vmem>>, vector<1x32x128xf32>,
    return
  }
  func.func @transform_0(%arg0: i32, %arg1: i32) -> (i32, i32, i32) {
    %c0_i32 = arith.constant 0 : i32
    %c0_i32_0 = arith.constant 0 : i32
    return %arg0, %c0_i32, %arg1 : i32, i32, i32
  }
  func.func @transform_1(%arg0: i32, %arg1: i32) -> (i32, i32, i32) {
    %c0_i32 = arith.constant 0 : i32
    %c0_i32_0 = arith.constant 0 : i32
    %c0_i32_1 = arith.constant 0 : i32
    return %arg0, %c0_i32, %c0_i32_0 : i32, i32, i32
  }
  func.func @transform_2(%arg0: i32, %arg1: i32) -> (i32, i32, i32) {
    %c0_i32 = arith.constant 0 : i32
    %c0_i32_0 = arith.constant 0 : i32
    %c0_i32_1 = arith.constant 0 : i32
    return %arg0, %c0_i32, %c0_i32_0 : i32, i32, i32
  }
  func.func @transform_3(%arg0: i32, %arg1: i32) -> (i32, i32, i32) {
    %c0_i32 = arith.constant 0 : i32
    %c0_i32_0 = arith.constant 0 : i32
    return %arg0, %c0_i32, %arg1 : i32, i32, i32
  }
}

</mosaic_0001>

<llo_original>
// kernel: tpu_custom_call.1
$region0: #{tpu_custom_call.1}
  #allocation0 [shape = 'u32[]', space=smem, size = 0x4, offset = 0x4, fixed_abs, tag = 'smem constant byte address 0x4 - core index']
  #allocation1 [shape = 'u32[144,128]{1,0:T(1,128)}', space=vmem, size = 0x12000, scoped, tag = 'internal scratch']
  %s0 = inlined_call_operand.vmem [shape: f32[2,32,256], index: 0, kind: input, shape index: {}]
  %s1 = inlined_call_operand.vmem [shape: f32[2,32,1], index: 1, kind: input, shape index: {}]
  %s2 = inlined_call_operand.vmem [shape: f32[2,32,1], index: 2, kind: input, shape index: {}]
  %s3 = inlined_call_operand.hbm [shape: f32[2,32,256], index: 3, kind: output, shape index: {}]
  %s4 = sld [smem:[#allocation0]]
  $region83: #{tpu_custom_call.1} parent=0
    _
  %s6 = ssub.s32 1, %s4
  %s7 = scalar_select 0, %s6, %s4
  $region1: #{tpu_custom_call.1} parent=0
    #allocation2 [shape = 'u8[32768]{0}', space=vmem, size = 0x8000, scoped, tag = 'input window, operand 0']
    #allocation3 [shape = 'u8[32768]{0}', space=vmem, size = 0x8000, scoped, tag = 'output window, operand 0']
    #allocation4 [shape = 's32[2]{0}', space=sflag, size = 0x8, scoped, tag = 'scoped memory for tpu_custom_call.1']
    %8 = vsyncpa [#allocation4], 0
    %s9 = scalar_lea.sflag [#allocation4], 1
    %10 = vsyncpa %s9, 0
    loop: start=0, step=1, limit=6
    $region2: #{tpu_custom_call.1} parent=1 // loop_pre_header
      _
    $region3: #{tpu_custom_call.1} parent=1 // loop_header
      %s12 = sphi 0, %s16
      %p13 = scmp.ge.s32.totalorder %s12, 6
      %s19 = sphi 0, %s31
      %s20 = sphi 0, %s27
      %s21 = sphi 0, %s19
      %s22 = sphi 0, %s20
      %s23 = sphi 0, %s21
      %s24 = sphi 0, %s22
      %s36 = sphi 0, %s38
      %s39 = sphi 0, %s36
      %s40 = sphi 0, %s39
      %s56 = sphi 0, %s40
      %s62 = sphi 0, %s64
      %s65 = sphi 0, %s62
      %s66 = sphi 0, %s65
      %s82 = sphi 0, %s66
      %s88 = sphi 0, %s90
      %s91 = sphi 0, %s88
      %s92 = sphi 0, %s91
      %s108 = sphi 0, %s92
      %s116 = sphi 0, %s118
      %s119 = sphi 0, %s116
      %s120 = sphi 0, %s119
      %s136 = sphi 0, %s120
    $region4: #{tpu_custom_call.1} parent=1 // loop_header_branch
      %15 = sbr.rel (%p13) target = $region8
    $region5: #{tpu_custom_call.1} parent=1 // loop_body
      %s17 = ssub.s32 %s12, 1
      %s18 = ssub.s32 %s12, 2
      %s25 = sadd.s32 1, %s20
      %p26 = scmp.ge.s32.totalorder %s25, 2
      %s27 = scalar_select %p26, 0, %s25
      %s28 = sadd.s32 1, %s19
      %s29 = scalar_select %p26, %s28, %s19
      %p30 = scmp.ge.s32.totalorder %s29, 2
      %s31 = scalar_select %p30, 0, %s29
      %s32 = ssub.s32 %s19, %s31
      %s33 = ssub.s32 %s20, %s27
      %s34 = sor.u32 %s32, %s33
      %p35 = scmp.eq.s32.totalorder %s34, 0
      %s37 = sadd.s32 %s36, 1
      %s38 = scalar_select %p35, %s36, %s37
      %p41 = pneg %p35
      %p42 = scmp.eq.s32.totalorder %s12, 3
      %p43 = por %p41, %p42
      %p44 = scmp.ne.s32.totalorder %s36, %s39
      %p45 = scmp.eq.s32.totalorder %s12, 0
      %p46 = por %p44, %p45
      %p47 = scmp.ne.s32.totalorder %s36, %s39
      %p48 = scmp.eq.s32.totalorder %s17, 3
      %p49 = por %p47, %p48
      %p50 = scmp.ne.s32.totalorder %s39, %s40
      %p51 = scmp.eq.s32.totalorder %s17, 0
      %p52 = por %p50, %p51
      %p53 = scmp.ne.s32.totalorder %s39, %s40
      %p54 = scmp.eq.s32.totalorder %s18, 3
      %p55 = por %p53, %p54
      %p57 = scmp.ne.s32.totalorder %s40, %s56
      %p58 = scmp.eq.s32.totalorder %s18, 0
      %p59 = por %p57, %p58
      %s60 = ssub.s32 %s19, %s31
      %p61 = scmp.eq.s32.totalorder %s60, 0
      %s63 = sadd.s32 %s62, 1
      %s64 = scalar_select %p61, %s62, %s63
      %p67 = pneg %p61
      %p68 = scmp.eq.s32.totalorder %s12, 3
      %p69 = por %p67, %p68
      %p70 = scmp.ne.s32.totalorder %s62, %s65
      %p71 = scmp.eq.s32.totalorder %s12, 0
      %p72 = por %p70, %p71
      %p73 = scmp.ne.s32.totalorder %s62, %s65
      %p74 = scmp.eq.s32.totalorder %s17, 3
      %p75 = por %p73, %p74
      %p76 = scmp.ne.s32.totalorder %s65, %s66
      %p77 = scmp.eq.s32.totalorder %s17, 0
      %p78 = por %p76, %p77
      %p79 = scmp.ne.s32.totalorder %s65, %s66
      %p80 = scmp.eq.s32.totalorder %s18, 3
      %p81 = por %p79, %p80
      %p83 = scmp.ne.s32.totalorder %s66, %s82
      %p84 = scmp.eq.s32.totalorder %s18, 0
      %p85 = por %p83, %p84
      %s86 = ssub.s32 %s19, %s31
      %p87 = scmp.eq.s32.totalorder %s86, 0
      %s89 = sadd.s32 %s88, 1
      %s90 = scalar_select %p87, %s88, %s89
      %p93 = pneg %p87
      %p94 = scmp.eq.s32.totalorder %s12, 3
      %p95 = por %p93, %p94
      %p96 = scmp.ne.s32.totalorder %s88, %s91
      %p97 = scmp.eq.s32.totalorder %s12, 0
      %p98 = por %p96, %p97
      %p99 = scmp.ne.s32.totalorder %s88, %s91
      %p100 = scmp.eq.s32.totalorder %s17, 3
      %p101 = por %p99, %p100
      %p102 = scmp.ne.s32.totalorder %s91, %s92
      %p103 = scmp.eq.s32.totalorder %s17, 0
      %p104 = por %p102, %p103
      %p105 = scmp.ne.s32.totalorder %s91, %s92
      %p106 = scmp.eq.s32.totalorder %s18, 3
      %p107 = por %p105, %p106
      %p109 = scmp.ne.s32.totalorder %s92, %s108
      %p110 = scmp.eq.s32.totalorder %s18, 0
      %p111 = por %p109, %p110
      %s112 = ssub.s32 %s19, %s31
      %s113 = ssub.s32 %s20, %s27
      %s114 = sor.u32 %s112, %s113
      %p115 = scmp.eq.s32.totalorder %s114, 0
      %s117 = sadd.s32 %s116, 1
      %s118 = scalar_select %p115, %s116, %s117
      %p121 = pneg %p115
      %p122 = scmp.eq.s32.totalorder %s12, 3
      %p123 = por %p121, %p122
      %p124 = scmp.ne.s32.totalorder %s116, %s119
      %p125 = scmp.eq.s32.totalorder %s12, 0
      %p126 = por %p124, %p125
      %p127 = scmp.ne.s32.totalorder %s116, %s119
      %p128 = scmp.eq.s32.totalorder %s17, 3
      %p129 = por %p127, %p128
      %p130 = scmp.ne.s32.totalorder %s119, %s120
      %p131 = scmp.eq.s32.totalorder %s17, 0
      %p132 = por %p130, %p131
      %p133 = scmp.ne.s32.totalorder %s119, %s120
      %p134 = scmp.eq.s32.totalorder %s18, 3
      %p135 = por %p133, %p134
      %p137 = scmp.ne.s32.totalorder %s120, %s136
      %p138 = scmp.eq.s32.totalorder %s18, 0
      %p139 = por %p137, %p138
      %p140 = scmp.le.s32.totalorder 1, %s12
      %p141 = scmp.lt.s32.totalorder %s12, 5
      %p142 = pnand %p140, %p141
      %p143 = pneg %p142
      // Predicated region
      $region9: #{tpu_custom_call.1} parent=5 // pred_check
        _
      $region10: #{tpu_custom_call.1} parent=5 // pred_check_branch
        %145 = sbr.rel (%p142) target = $region12
      $region11: #{tpu_custom_call.1} parent=5 // pred_region
        %s146 = ssub.s32 %s12, 1
      $region12: #{tpu_custom_call.1} parent=5 // pred_fallthru
        _
      %p147 = scmp.lt.s32.totalorder %s12, 4
      // Predicated region
      $region13: #{tpu_custom_call.1} parent=5 // pred_check
        %p148 = pneg %p147
      $region14: #{tpu_custom_call.1} parent=5 // pred_check_branch
        %150 = sbr.rel (%p148) target = $region16
      $region15: #{tpu_custom_call.1} parent=5 // pred_region
        // Predicated region
        $region17: #{tpu_custom_call.1} parent=15 // pred_check
          %p151 = pneg %p46
        $region18: #{tpu_custom_call.1} parent=15 // pred_check_branch
          %153 = sbr.rel (%p151) target = $region20
        $region19: #{tpu_custom_call.1} parent=15 // pred_region
          %s154 = sand.u32 %s36, 1
          %s155 = sand.u32 %s36, 1
          %s156 = smul.addr %s155, 32
          %s157 = scalar_lea.vmem [#allocation2], %s156
          %s158 = smul.addr %s19, 8
          %s159 = sadd.s32 %s20, %s158
          %s160 = smul.addr %s159, 8
          %s161 = scalar_lea.vmem %s0, %s160
          // Predicated region
          $region21: #{tpu_custom_call.1} parent=19 // pred_check
            _
          $region22: #{tpu_custom_call.1} parent=19 // pred_check_branch
            %163 = sbr.rel (0) target = $region24
          $region23: #{tpu_custom_call.1} parent=19 // pred_region
            // Predicated region
            $region25: #{tpu_custom_call.1} parent=23 // pred_check
              _
            $region26: #{tpu_custom_call.1} parent=23 // pred_check_branch
              %165 = sbr.rel (0) target = $region28
            $region27: #{tpu_custom_call.1} parent=23 // pred_region
              // Predicated region
              $region40: #{tpu_custom_call.1} parent=27 // pred_check
                _
              $region41: #{tpu_custom_call.1} parent=27 // pred_check_branch
                %186 = sbr.rel (0) target = $region43
              $region42: #{tpu_custom_call.1} parent=27 // pred_region
                loop: start=0, step=1, limit=1
                $region44: #{tpu_custom_call.1} parent=42 // loop_pre_header
                  _
                $region45: #{tpu_custom_call.1} parent=42 // loop_header
                  %s188 = sphi 0, %s192
                  %p189 = scmp.ge.s32.totalorder %s188, 1
                  %s193 = sphi %s161, %s161
                  %s194 = sphi %s157, %s157
                $region46: #{tpu_custom_call.1} parent=42 // loop_header_branch
                  %191 = sbr.rel (%p189) target = $region50
                $region47: #{tpu_custom_call.1} parent=42 // loop_body
                  %v195 = vld [vmem:[%s193] sm:$0xff]
                  %196 = vst [vmem:[%s194] sm:$0xff] %v195
                  %v197 = vld [vmem:[%s193 + $0x10] sm:$0xff]
                  %198 = vst [vmem:[%s194 + $0x8] sm:$0xff] %v197
                  %v199 = vld [vmem:[%s193 + $0x20] sm:$0xff]
                  %200 = vst [vmem:[%s194 + $0x10] sm:$0xff] %v199
                  %v201 = vld [vmem:[%s193 + $0x30] sm:$0xff]
                  %202 = vst [vmem:[%s194 + $0x18] sm:$0xff] %v201
                $region48: #{tpu_custom_call.1} parent=42 // loop_footer
                  %s192 = sadd.s32 1, %s188
                $region49: #{tpu_custom_call.1} parent=42 // loop_footer_branch
                  %187 = sbr.rel target = $region45
                $region50: #{tpu_custom_call.1} parent=42 // loop_exit
                  _
              $region43: #{tpu_custom_call.1} parent=27 // pred_fallthru
                _
              // Predicated region
              $region51: #{tpu_custom_call.1} parent=27 // pred_check
                _
              $region52: #{tpu_custom_call.1} parent=27 // pred_check_branch
                %204 = sbr.rel target = $region54
              $region53: #{tpu_custom_call.1} parent=27 // pred_region
                _
              $region54: #{tpu_custom_call.1} parent=27 // pred_fallthru
                _
            $region28: #{tpu_custom_call.1} parent=23 // pred_fallthru
              _
            // Predicated region
            $region29: #{tpu_custom_call.1} parent=23 // pred_check
              _
            $region30: #{tpu_custom_call.1} parent=23 // pred_check_branch
              %167 = sbr.rel target = $region32
            $region31: #{tpu_custom_call.1} parent=23 // pred_region
              loop: start=0, step=1, limit=1
              $region33: #{tpu_custom_call.1} parent=31 // loop_pre_header
                _
              $region34: #{tpu_custom_call.1} parent=31 // loop_header
                %s170 = sphi 0, %s174
                %p171 = scmp.ge.s32.totalorder %s170, 1
                %s175 = sphi %s161, %s161
                %s176 = sphi %s157, %s157
              $region35: #{tpu_custom_call.1} parent=31 // loop_header_branch
                %173 = sbr.rel (%p171) target = $region39
              $region36: #{tpu_custom_call.1} parent=31 // loop_body
                %v177 = vld [vmem:[%s175] sm:$0xff]
                %178 = vst [vmem:[%s176] sm:$0xff] %v177
                %v179 = vld [vmem:[%s175 + $0x10] sm:$0xff]
                %180 = vst [vmem:[%s176 + $0x8] sm:$0xff] %v179
                %v181 = vld [vmem:[%s175 + $0x20] sm:$0xff]
                %182 = vst [vmem:[%s176 + $0x10] sm:$0xff] %v181
                %v183 = vld [vmem:[%s175 + $0x30] sm:$0xff]
                %184 = vst [vmem:[%s176 + $0x18] sm:$0xff] %v183
              $region37: #{tpu_custom_call.1} parent=31 // loop_footer
                %s174 = sadd.s32 1, %s170
              $region38: #{tpu_custom_call.1} parent=31 // loop_footer_branch
                %169 = sbr.rel target = $region34
              $region39: #{tpu_custom_call.1} parent=31 // loop_exit
                _
            $region32: #{tpu_custom_call.1} parent=23 // pred_fallthru
              _
          $region24: #{tpu_custom_call.1} parent=19 // pred_fallthru
            _
          %205 = vnop
        $region20: #{tpu_custom_call.1} parent=15 // pred_fallthru
          _
        // Predicated region
        $region55: #{tpu_custom_call.1} parent=15 // pred_check
          %p206 = pneg %p72
        $region56: #{tpu_custom_call.1} parent=15 // pred_check_branch
          %208 = sbr.rel (%p206) target = $region58
        $region57: #{tpu_custom_call.1} parent=15 // pred_region
          %p209 = scmp.lt.s32.totalorder %s19, 1
          %s210 = scalar_select %p209, %s19, 1
          %s211 = smul.addr %s210, 4
          %s212 = smul.addr %s211, 8
          %s213 = scalar_lea.vmem %s1, %s212
        $region58: #{tpu_custom_call.1} parent=15 // pred_fallthru
          _
        // Predicated region
        $region59: #{tpu_custom_call.1} parent=15 // pred_check
          %p214 = pneg %p98
        $region60: #{tpu_custom_call.1} parent=15 // pred_check_branch
          %216 = sbr.rel (%p214) target = $region62
        $region61: #{tpu_custom_call.1} parent=15 // pred_region
          %p217 = scmp.lt.s32.totalorder %s19, 1
          %s218 = scalar_select %p217, %s19, 1
          %s219 = smul.addr %s218, 4
          %s220 = smul.addr %s219, 8
          %s221 = scalar_lea.vmem %s2, %s220
        $region62: #{tpu_custom_call.1} parent=15 // pred_fallthru
          _
      $region16: #{tpu_custom_call.1} parent=5 // pred_fallthru
        _
      %p222 = scmp.le.s32.totalorder 1, %s12
      %p223 = scmp.lt.s32.totalorder %s12, 5
      %p224 = pnand %p222, %p223
      %p225 = pneg %p224
      // Predicated region
      $region63: #{tpu_custom_call.1} parent=5 // pred_check
        _
      $region64: #{tpu_custom_call.1} parent=5 // pred_check_branch
        %227 = sbr.rel (%p224) target = $region66
      $region65: #{tpu_custom_call.1} parent=5 // pred_region
        %s228 = ssub.s32 %s12, 1
        %s229 = sand.u32 %s39, 1
        %s230 = sand.u32 %s39, 1
        %s231 = smul.addr %s230, 32
        %s232 = scalar_lea.vmem [#allocation2], %s231
        // Predicated region
        $region67: #{tpu_custom_call.1} parent=65 // pred_check
          %p233 = pneg %p52
        $region68: #{tpu_custom_call.1} parent=65 // pred_check_branch
          %235 = sbr.rel (%p233) target = $region70
        $region69: #{tpu_custom_call.1} parent=65 // pred_region
          _
        $region70: #{tpu_custom_call.1} parent=65 // pred_fallthru
          _
        %s236 = sand.u32 %s39, 1
        %s237 = sand.u32 %s39, 1
        %s238 = smul.addr %s237, 32
        %s239 = scalar_lea.vmem [#allocation2], %s238
        %p240 = pneg %p52
        %p241 = pneg %p49
        %p242 = scmp.lt.s32.totalorder %s21, 1
        %s243 = scalar_select %p242, %s21, 1
        %s244 = smul.addr %s243, 4
        %s245 = smul.addr %s244, 8
        %s246 = scalar_lea.vmem %s1, %s245
        %p247 = pneg %p78
        %p248 = pneg %p75
        %p249 = scmp.lt.s32.totalorder %s21, 1
        %s250 = scalar_select %p249, %s21, 1
        %s251 = smul.addr %s250, 4
        %s252 = smul.addr %s251, 8
        %s253 = scalar_lea.vmem %s2, %s252
        %p254 = pneg %p104
        %p255 = pneg %p101
        %p256 = pneg %p132
        %p257 = pneg %p129
        %s258 = sand.u32 %s119, 1
        %s259 = scalar_lea.sflag [#allocation4], %s258
        %s260 = sand.u32 %s119, 1
        %s261 = smul.addr %s260, 32
        %s262 = scalar_lea.vmem [#allocation3], %s261
        %p263 = scmp.lt.s32.totalorder %s21, 1
        %s264 = scalar_select %p263, %s21, 1
        %s265 = smul.addr %s264, 4
        %s266 = smul.addr %s265, 8
        %s267 = scalar_lea.vmem %s1, %s266
        %p268 = scmp.lt.s32.totalorder %s21, 1
        %s269 = scalar_select %p268, %s21, 1
        %s270 = smul.addr %s269, 4
        %s271 = smul.addr %s270, 8
        %s272 = scalar_lea.vmem %s2, %s271
        %v273 = vld [vmem:[%s232] sm:$0xff]
        %v274 = vld [vmem:[%s232 + $0x8] sm:$0xff]
        %v275 = vld [vmem:[%s232 + $0x10] sm:$0xff]
        %v276 = vld [vmem:[%s232 + $0x18] sm:$0xff]
        %v277 = vld [vmem:[%s267] sm:$0xff]
        %v278 = vld [vmem:[%s267 + $0x8] sm:$0xff]
        %v279 = vld [vmem:[%s267 + $0x10] sm:$0xff]
        %v280 = vld [vmem:[%s267 + $0x18] sm:$0xff]
        %v281 = vld [vmem:[%s272] sm:$0xff]
        %v282 = vld [vmem:[%s272 + $0x8] sm:$0xff]
        %v283 = vld [vmem:[%s272 + $0x10] sm:$0xff]
        %v284 = vld [vmem:[%s272 + $0x18] sm:$0xff]
        %286 = vset.pattern.permute.xlu0 0
        %287 = vperm.xlu0 %286, %v277
        %v288 = vpop.permute.xlu0 %287
        %291 = vset.pattern.permute.xlu0 0
        %292 = vperm.xlu0 %291, %v278
        %v293 = vpop.permute.xlu0 %292
        %296 = vset.pattern.permute.xlu0 0
        %297 = vperm.xlu0 %296, %v279
        %v298 = vpop.permute.xlu0 %297
        %301 = vset.pattern.permute.xlu0 0
        %302 = vperm.xlu0 %301, %v280
        %v303 = vpop.permute.xlu0 %302
        %v305 = vmul.f32 %v273, %v288
        %v306 = vmul.f32 %v274, %v293
        %v307 = vmul.f32 %v275, %v298
        %v308 = vmul.f32 %v276, %v303
        %v309 = vadd.f32 %v305, %v306
        %v310 = vadd.f32 %v309, %v307
        %v311 = vadd.f32 %v310, %v308
        %v312 = vrot.slane %v311, 4
        %v313 = vadd.f32 %v311, %v312
        %v314 = vrot.slane %v313, 2
        %v315 = vadd.f32 %v313, %v314
        %v316 = vrot.slane %v315, 1
        %v317 = vadd.f32 %v315, %v316
        %319 = vset.pattern.permute.xlu0 0
        %320 = vperm.xlu0 %319, %v281
        %v321 = vpop.permute.xlu0 %320
        %324 = vset.pattern.permute.xlu0 0
        %325 = vperm.xlu0 %324, %v282
        %v326 = vpop.permute.xlu0 %325
        %329 = vset.pattern.permute.xlu0 0
        %330 = vperm.xlu0 %329, %v283
        %v331 = vpop.permute.xlu0 %330
        %334 = vset.pattern.permute.xlu0 0
        %335 = vperm.xlu0 %334, %v284
        %v336 = vpop.permute.xlu0 %335
        %v338 = vmul.f32 %v317, %v321
        %v339 = vmul.f32 %v317, %v326
        %v340 = vmul.f32 %v317, %v331
        %v341 = vmul.f32 %v317, %v336
        %v342 = vadd.f32 %v273, %v338
        %v343 = vadd.f32 %v274, %v339
        %v344 = vadd.f32 %v275, %v340
        %v345 = vadd.f32 %v276, %v341
        %v346 = vmul.f32 %v342, %v342
        %v347 = vmul.f32 %v343, %v343
        %v348 = vmul.f32 %v344, %v344
        %v349 = vmul.f32 %v345, %v345
        %v350 = vadd.f32 %v346, %v347
        %v351 = vadd.f32 %v350, %v348
        %v352 = vadd.f32 %v351, %v349
        %v353 = vrot.slane %v352, 4
        %v354 = vadd.f32 %v352, %v353
        %v355 = vrot.slane %v354, 2
        %v356 = vadd.f32 %v354, %v355
        %v357 = vrot.slane %v356, 1
        %v358 = vadd.f32 %v356, %v357
        %v359 = vrsqrt.pop %v358
        %v360 = vmul.f32 %v342, %v359
        %v361 = vmul.f32 %v343, %v359
        %v362 = vmul.f32 %v344, %v359
        %v363 = vmul.f32 %v345, %v359
        %364 = vst [vmem:[%s262] sm:$0xff] %v360
        %365 = vst [vmem:[%s262 + $0x8] sm:$0xff] %v361
        %366 = vst [vmem:[%s262 + $0x10] sm:$0xff] %v362
        %367 = vst [vmem:[%s262 + $0x18] sm:$0xff] %v363
        %s368 = sand.u32 %s119, 1
        %s369 = scalar_lea.sflag [#allocation4], %s368
        %s370 = sand.u32 %s119, 1
        %s371 = smul.addr %s370, 32
        %s372 = scalar_lea.vmem [#allocation3], %s371
        // Predicated region
        $region71: #{tpu_custom_call.1} parent=65 // pred_check
          %p373 = pneg %p129
        $region72: #{tpu_custom_call.1} parent=65 // pred_check_branch
          %375 = sbr.rel (%p373) target = $region74
        $region73: #{tpu_custom_call.1} parent=65 // pred_region
          %s377 = ssub.s32 512, 512
          %378 = vsyncadd %s369, %s377
          %s379 = smul.addr %s21, 8
          %s380 = sadd.s32 %s22, %s379
          %s381 = smul.addr %s380, 128
          %s382 = scalar_lea.hbm %s3, %s381
          %s383 = sshll.u32 %s372, 4
          %s384 = int_to_ptr.vmem [resolvable:$true] %s383
          %389 = dma.vmem_to_hbm [thread:$0]  %s384, 512, %s382, %s369, 128, 256, 8
        $region74: #{tpu_custom_call.1} parent=65 // pred_fallthru
          _
      $region66: #{tpu_custom_call.1} parent=5 // pred_fallthru
        _
      %p390 = scmp.le.s32.totalorder 2, %s12
      // Predicated region
      $region75: #{tpu_custom_call.1} parent=5 // pred_check
        %p391 = pneg %p390
      $region76: #{tpu_custom_call.1} parent=5 // pred_check_branch
        %393 = sbr.rel (%p391) target = $region78
      $region77: #{tpu_custom_call.1} parent=5 // pred_region
        %s394 = ssub.s32 %s12, 2
        // Predicated region
        $region79: #{tpu_custom_call.1} parent=77 // pred_check
          %p395 = pneg %p135
        $region80: #{tpu_custom_call.1} parent=77 // pred_check_branch
          %397 = sbr.rel (%p395) target = $region82
        $region81: #{tpu_custom_call.1} parent=77 // pred_region
          %s398 = sand.u32 %s120, 1
          %s399 = scalar_lea.sflag [#allocation4], %s398
          %s400 = sand.u32 %s120, 1
          %s401 = smul.addr %s400, 32
          %s402 = scalar_lea.vmem [#allocation3], %s401
          %403 = dma.done %s399, 512
        $region82: #{tpu_custom_call.1} parent=77 // pred_fallthru
          _
      $region78: #{tpu_custom_call.1} parent=5 // pred_fallthru
        _
    $region6: #{tpu_custom_call.1} parent=1 // loop_footer
      %s16 = sadd.s32 1, %s12
    $region7: #{tpu_custom_call.1} parent=1 // loop_footer_branch
      %11 = sbr.rel target = $region3
    $region8: #{tpu_custom_call.1} parent=1 // loop_exit
      _
    %404 = vsyncpa [#allocation4], 1
    %s405 = scalar_lea.sflag [#allocation4], 1
    %406 = vsyncpa %s405, 1

</llo_original>
